<compile_context>
chip_gen: v7x
topology: tpu7x:2x2x1
jax: 0.10.0
libtpu: 0.0.40
codegen_flags: <defaults>
</compile_context>

<pallas_src>
import functools

import jax
import jax.numpy as jnp
from jax.experimental import pallas as pl
from jax.experimental.pallas import tpu as pltpu


NEG_SLOPE = 0.2     # LeakyReLU slope used in RAVE residual units
HALO_BLK = 128      # lane width of the neighbour-tile halo blocks


def _leaky_relu(v):
    return jnp.where(v > 0, v, NEG_SLOPE * v)


def _residual_kernel(x_ref, xl_ref, xr_ref, w1_ref, b1_ref, w2_ref, b2_ref,
                     o_ref, *, ksize, dilation, n_ltiles):
    # x_ref:  (C, Lt)  current length tile of one batch element (NCL layout).
    # xl_ref: (C, 128) block ending exactly where this tile starts (left halo).
    # xr_ref: (C, 128) block starting exactly where this tile ends (right halo).
    # w1_ref: (C, K*C) bf16, fused-tap conv1 weight (Cout, K*Cin).
    # w2_ref: (C, C)   bf16, 1x1 conv weight (Cout, Cin).
    # b1_ref/b2_ref: (C, 1) f32 biases.
    l = pl.program_id(1)
    halo = (ksize // 2) * dilation
    lt = x_ref.shape[-1]

    x = x_ref[...]                                     # (C, Lt) f32

    # Halo columns from the neighbouring tiles; zero at the sequence edges
    # (Conv1d padding='same' zero-pads the post-activation signal).
    left = xl_ref[...][:, HALO_BLK - halo:]            # (C, halo)
    right = xr_ref[...][:, :halo]                      # (C, halo)
    left = jnp.where(l == 0, 0.0, left)
    right = jnp.where(l == n_ltiles - 1, 0.0, right)

    # LeakyReLU(0.2) over the haloed window, in f32 on the VPU.
    h = _leaky_relu(jnp.concatenate([left, x, right], axis=1))   # (C, Lt+2*halo)

    # Dilated conv1d as a single MXU matmul: stack the K shifted tap slices
    # along the channel (sublane) axis -> (K*C, Lt), contract with (C, K*C).
    taps = [h[:, t * dilation: t * dilation + lt] for t in range(ksize)]
    stacked = jnp.concatenate(taps, axis=0).astype(jnp.bfloat16)  # (K*C, Lt)
    acc = jnp.dot(w1_ref[...], stacked,
                  preferred_element_type=jnp.float32)             # (C, Lt) f32
    acc = acc + b1_ref[...]

    # LeakyReLU(0.2) -> 1x1 conv (pointwise matmul), f32 accumulation.
    h2 = _leaky_relu(acc).astype(jnp.bfloat16)
    y = jnp.dot(w2_ref[...], h2, preferred_element_type=jnp.float32)
    y = y + b2_ref[...]

    # Residual add (the Identity / AlignBranches branch).
    o_ref[...] = (y + x).astype(o_ref.dtype)


def residual_forward(x_ncl, w1, b1, w2, b2, *, dilation, l_tile=256):
    """x_ncl: (B, C, L) float32 in PyTorch NCL layout. Returns (B, C, L).

    w1: (K, Cin, Cout), b1: (C,), w2: (Cin, Cout), b2: (C,).
    Requires L % l_tile == 0, l_tile % 128 == 0, C % 8 == 0,
    (K//2)*dilation <= 128.
    """
    B, C, L = x_ncl.shape
    K = w1.shape[0]
    halo = (K // 2) * dilation
    assert C % 8 == 0, "channel count must be a multiple of 8 (sublanes)"
    assert l_tile % HALO_BLK == 0 and L % l_tile == 0, "L must tile by l_tile (x128)"
    assert halo <= HALO_BLK, "conv receptive-field halo must fit one 128 block"

    nt = L // l_tile                 # number of length tiles
    nb = l_tile // HALO_BLK          # 128-wide blocks per length tile
    n_halo_blocks = L // HALO_BLK

    # Fold the weights into MXU-friendly bf16 operand layouts (tiny, done once):
    #   w1 (K, Cin, Cout) -> (Cout, K*Cin) matching the in-kernel tap stacking,
    #   w2 (Cin, Cout)    -> (Cout, Cin).
    w1r = jnp.transpose(w1, (2, 0, 1)).reshape(C, K * C).astype(jnp.bfloat16)
    w2t = jnp.transpose(w2).astype(jnp.bfloat16)
    b1c = b1.reshape(C, 1).astype(jnp.float32)
    b2c = b2.reshape(C, 1).astype(jnp.float32)

    kernel = functools.partial(_residual_kernel, ksize=K, dilation=dilation,
                               n_ltiles=nt)

    return pl.pallas_call(
        kernel,
        out_shape=jax.ShapeDtypeStruct((B, C, L), x_ncl.dtype),
        grid_spec=pltpu.PrefetchScalarGridSpec(
            num_scalar_prefetch=0,
            grid=(B, nt),
            in_specs=[
                # Current length tile (lane-dense: l_tile is a multiple of 128).
                pl.BlockSpec((None, C, l_tile), lambda b, l: (b, 0, l)),
                # 128-wide halo blocks from the left / right neighbour tiles
                # (clamped at the sequence edges; zeroed in-kernel there).
                pl.BlockSpec((None, C, HALO_BLK),
                             lambda b, l: (b, 0, jnp.maximum(l * nb - 1, 0))),
                pl.BlockSpec((None, C, HALO_BLK),
                             lambda b, l: (b, 0, jnp.minimum((l + 1) * nb,
                                                             n_halo_blocks - 1))),
                pl.BlockSpec((C, K * C), lambda b, l: (0, 0)),   # w1 fused taps
                pl.BlockSpec((C, 1), lambda b, l: (0, 0)),       # b1
                pl.BlockSpec((C, C), lambda b, l: (0, 0)),       # w2 (1x1 conv)
                pl.BlockSpec((C, 1), lambda b, l: (0, 0)),       # b2
            ],
            out_specs=pl.BlockSpec((None, C, l_tile), lambda b, l: (b, 0, l)),
        ),
        compiler_params=pltpu.CompilerParams(
            # Both axes independent -> v7x's 2 TensorCores split the work.
            dimension_semantics=("parallel", "parallel"),
            # Tiled blocks keep per-step VMEM well under 1 MiB; 32 MiB is safe
            # headroom on every generation (v7x scoped default / 64 MiB phys).
            vmem_limit_bytes=32 * 1024 * 1024,
        ),
    )(x_ncl, x_ncl, x_ncl, w1r, b1c, w2t, b2c)


def reference_forward(x_ncl, w1, b1, w2, b2, *, dilation):
    """Pure-JAX reference with the same bf16-operand / f32-accumulate matmuls."""
    x = x_ncl.astype(jnp.float32)
    B, C, L = x.shape
    K = w1.shape[0]
    halo = (K // 2) * dilation
    h = jnp.where(x > 0, x, NEG_SLOPE * x)
    hp = jnp.pad(h, ((0, 0), (0, 0), (halo, halo)))
    acc = jnp.zeros((B, C, L), jnp.float32)
    for t in range(K):
        seg = hp[:, :, t * dilation: t * dilation + L]          # (B, C, L)
        acc = acc + jnp.einsum("cd,bcl->bdl",
                               w1[t].astype(jnp.bfloat16),
                               seg.astype(jnp.bfloat16),
                               preferred_element_type=jnp.float32)
    acc = acc + b1[None, :, None]
    h2 = jnp.where(acc > 0, acc, NEG_SLOPE * acc)
    y = jnp.einsum("cd,bcl->bdl",
                   w2.astype(jnp.bfloat16),
                   h2.astype(jnp.bfloat16),
                   preferred_element_type=jnp.float32)
    y = y + b2[None, :, None]
    return y + x


if __name__ == "__main__":
    # Small but TPU-tile-friendly shapes: batch=2, channels=64, length=512,
    # kernel=3, dilation=3, length tile=256 (-> 2 L-tiles, exercising the
    # cross-tile halo path on both sides).
    B, C, L, K, DIL = 2, 64, 512, 3, 3
    L_TILE = 256

    key = jax.random.PRNGKey(0)
    kx, k1, k2, k3, k4 = jax.random.split(key, 5)

    x = jax.random.normal(kx, (B, C, L), dtype=jnp.float32)          # NCL input
    # Synthetic deterministic params (weight_norm reparam folded into weights).
    w1 = 0.1 * jax.random.normal(k1, (K, C, C), dtype=jnp.float32)   # (tap, Cin, Cout)
    b1 = 0.1 * jax.random.normal(k2, (C,), dtype=jnp.float32)
    w2 = 0.1 * jax.random.normal(k3, (C, C), dtype=jnp.float32)      # (Cin, Cout)
    b2 = 0.1 * jax.random.normal(k4, (C,), dtype=jnp.float32)

    out = residual_forward(x, w1, b1, w2, b2, dilation=DIL, l_tile=L_TILE)
    out = jax.block_until_ready(out)

    ref = reference_forward(x, w1, b1, w2, b2, dilation=DIL)
    assert out.shape == (B, C, L)
    max_err = float(jnp.max(jnp.abs(out - ref)))
    assert jnp.allclose(out, ref, atol=5e-3, rtol=5e-3), (
        f"mismatch vs reference (max abs err {max_err})")

    print("KERNEL_OK")
</pallas_src>

<mosaic_0001>
module attributes {stable_mosaic.version = 11 : i64} {
  func.func @_residual_kernel(%arg0: i32, %arg1: i32, %arg2: memref<1x64x256xf32, #tpu.memory_space<vmem>>, %arg3: memref<1x64x128xf32, #tpu.memory_space<vmem>>, %arg4: memref<1x64x128xf32, #tpu.memory_space<vmem>>, %arg5: memref<64x192xbf16, #tpu.memory_space<vmem>>, %arg6: memref<64x1xf32, #tpu.memory_space<vmem>>, %arg7: memref<64x64xbf16, #tpu.memory_space<vmem>>, %arg8: memref<64x1xf32, #tpu.memory_space<vmem>>, %arg9: memref<1x64x256xf32, #tpu.memory_space<vmem>>) attributes {dimension_semantics = [#tpu.dimension_semantics<parallel>, #tpu.dimension_semantics<parallel>], iteration_bounds = array<i64: 2, 2>, scalar_prefetch = 0 : i64, scratch_operands = 0 : i64, tpu.core_type = #tpu.core_type<tc>, window_params = [{transform_indices = @transform_0, window_bounds = array<i64: 1, 64, 256>}, {transform_indices = @transform_1, window_bounds = array<i64: 1, 64, 128>}, {transform_indices = @transform_2, window_bounds = array<i64: 1, 64, 128>}, {pipeline_mode = #tpu.pipeline_mode<synchronous>, transform_indices = @transform_3, window_bounds = array<i64: 64, 192>}, {pipeline_mode = #tpu.pipeline_mode<synchronous>, transform_indices = @transform_4, window_bounds = array<i64: 64, 1>}, {pipeline_mode = #tpu.pipeline_mode<synchronous>, transform_indices = @transform_5, window_bounds = array<i64: 64, 64>}, {pipeline_mode = #tpu.pipeline_mode<synchronous>, transform_indices = @transform_6, window_bounds = array<i64: 64, 1>}, {transform_indices = @transform_7, window_bounds = array<i64: 1, 64, 256>}]} {
    %c0 = arith.constant 0 : index
    %c0_0 = arith.constant 0 : index
    %c0_1 = arith.constant 0 : index
    %0 = vector.load %arg2[%c0, %c0_0, %c0_1] : memref<1x64x256xf32, #tpu.memory_space<vmem>>, vector<1x64x256xf32>
    %1 = vector.shape_cast %0 : vector<1x64x256xf32> to vector<64x256xf32>
    %c0_2 = arith.constant 0 : index
    %c0_3 = arith.constant 0 : index
    %c0_4 = arith.constant 0 : index
    %2 = vector.load %arg3[%c0_2, %c0_3, %c0_4] : memref<1x64x128xf32, #tpu.memory_space<vmem>>, vector<1x64x128xf32>
    %3 = vector.shape_cast %2 : vector<1x64x128xf32> to vector<64x128xf32>
    %4 = vector.extract_strided_slice %3 {offsets = [0, 125], sizes = [64, 3], strides = [1, 1]} : vector<64x128xf32> to vector<64x3xf32>
    %c0_5 = arith.constant 0 : index
    %c0_6 = arith.constant 0 : index
    %c0_7 = arith.constant 0 : index
    %5 = vector.load %arg4[%c0_5, %c0_6, %c0_7] : memref<1x64x128xf32, #tpu.memory_space<vmem>>, vector<1x64x128xf32>
    %6 = vector.shape_cast %5 : vector<1x64x128xf32> to vector<64x128xf32>
    %7 = vector.extract_strided_slice %6 {offsets = [0, 0], sizes = [64, 3], strides = [1, 1]} : vector<64x128xf32> to vector<64x3xf32>
    %c0_i32 = arith.constant 0 : i32
    %8 = arith.cmpi eq, %arg1, %c0_i32 : i32
    %cst = arith.constant 0.000000e+00 : f32
    %9 = vector.broadcast %cst : f32 to vector<64x3xf32>
    %10 = arith.select %8, %9, %4 : vector<64x3xf32>
    %c1_i32 = arith.constant 1 : i32
    %11 = arith.cmpi eq, %arg1, %c1_i32 : i32
    %cst_8 = arith.constant 0.000000e+00 : f32
    %12 = vector.broadcast %cst_8 : f32 to vector<64x3xf32>
    %13 = arith.select %11, %12, %7 : vector<64x3xf32>
    %14 = tpu.concatenate %10, %1, %13 in 1 : vector<64x3xf32>, vector<64x256xf32>, vector<64x3xf32> -> vector<64x262xf32>
    %cst_9 = arith.constant 0.000000e+00 : f32
    %15 = vector.broadcast %cst_9 : f32 to vector<64x262xf32>
    %16 = arith.cmpf ogt, %14, %15 : vector<64x262xf32>
    %cst_10 = arith.constant 2.000000e-01 : f32
    %17 = vector.broadcast %cst_10 : f32 to vector<64x262xf32>
    %18 = arith.mulf %17, %14 : vector<64x262xf32>
    %19 = arith.select %16, %14, %18 : vector<64x262xi1>, vector<64x262xf32>
    %20 = vector.extract_strided_slice %19 {offsets = [0, 0], sizes = [64, 256], strides = [1, 1]} : vector<64x262xf32> to vector<64x256xf32>
    %21 = vector.extract_strided_slice %19 {offsets = [0, 3], sizes = [64, 256], strides = [1, 1]} : vector<64x262xf32> to vector<64x256xf32>
    %22 = vector.extract_strided_slice %19 {offsets = [0, 6], sizes = [64, 256], strides = [1, 1]} : vector<64x262xf32> to vector<64x256xf32>
    %23 = tpu.concatenate %20, %21, %22 in 0 : vector<64x256xf32>, vector<64x256xf32>, vector<64x256xf32> -> vector<192x256xf32>
    %24 = arith.truncf %23 : vector<192x256xf32> to vector<192x256xbf16>
    %c0_11 = arith.constant 0 : index
    %c0_12 = arith.constant 0 : index
    %25 = vector.load %arg5[%c0_11, %c0_12] : memref<64x192xbf16, #tpu.memory_space<vmem>>, vector<64x192xbf16>
    %cst_13 = arith.constant dense<0.000000e+00> : vector<64x256xf32>
    %26 = tpu.matmul %25, %24, %cst_13 {dimension_numbers = #tpu.dot_dimension_numbers<[1], [0], [0], [1], [0, 0, 1, 1], [], []>} : vector<64x192xbf16>, vector<192x256xbf16>, vector<64x256xf32> -> vector<64x256xf32>
    %c0_14 = arith.constant 0 : index
    %c0_15 = arith.constant 0 : index
    %27 = vector.load %arg6[%c0_14, %c0_15] : memref<64x1xf32, #tpu.memory_space<vmem>>, vector<64x1xf32>
    %28 = vector.broadcast %27 : vector<64x1xf32> to vector<64x256xf32>
    %29 = arith.addf %26, %28 : vector<64x256xf32>
    %cst_16 = arith.constant 0.000000e+00 : f32
    %30 = vector.broadcast %cst_16 : f32 to vector<64x256xf32>
    %31 = arith.cmpf ogt, %29, %30 : vector<64x256xf32>
    %cst_17 = arith.constant 2.000000e-01 : f32
    %32 = vector.broadcast %cst_17 : f32 to vector<64x256xf32>
    %33 = arith.mulf %32, %29 : vector<64x256xf32>
    %34 = arith.select %31, %29, %33 : vector<64x256xi1>, vector<64x256xf32>
    %35 = arith.truncf %34 : vector<64x256xf32> to vector<64x256xbf16>
    %c0_18 = arith.constant 0 : index
    %c0_19 = arith.constant 0 : index
    %36 = vector.load %arg7[%c0_18, %c0_19] : memref<64x64xbf16, #tpu.memory_space<vmem>>, vector<64x64xbf16>
    %cst_20 = arith.constant dense<0.000000e+00> : vector<64x256xf32>
    %37 = tpu.matmul %36, %35, %cst_20 {dimension_numbers = #tpu.dot_dimension_numbers<[1], [0], [0], [1], [0, 0, 1, 1], [], []>} : vector<64x64xbf16>, vector<64x256xbf16>, vector<64x256xf32> -> vector<64x256xf32>
    %c0_21 = arith.constant 0 : index
    %c0_22 = arith.constant 0 : index
    %38 = vector.load %arg8[%c0_21, %c0_22] : memref<64x1xf32, #tpu.memory_space<vmem>>, vector<64x1xf32>
    %39 = vector.broadcast %38 : vector<64x1xf32> to vector<64x256xf32>
    %40 = arith.addf %37, %39 : vector<64x256xf32>
    %41 = arith.addf %40, %1 : vector<64x256xf32>
    %c0_23 = arith.constant 0 : index
    %c0_24 = arith.constant 0 : index
    %c0_25 = arith.constant 0 : index
    %42 = vector.load %arg9[%c0_23, %c0_24, %c0_25] : memref<1x64x256xf32, #tpu.memory_space<vmem>>, vector<1x64x256xf32>
    %43 = vector.shape_cast %42 : vector<1x64x256xf32> to vector<64x256xf32>
    %44 = vector.shape_cast %41 : vector<64x256xf32> to vector<1x64x256xf32>
    tpu.vector_store %arg9[%c0_23, %c0_24, %c0_25], %44 {strides = array<i32>} : memref<1x64x256xf32, #tpu.memory_space<vmem>>, vector<1x64x256xf32>,
    return
  }
  func.func @transform_0(%arg0: i32, %arg1: i32) -> (i32, i32, i32) {
    %c0_i32 = arith.constant 0 : i32
    %c0_i32_0 = arith.constant 0 : i32
    return %arg0, %c0_i32, %arg1 : i32, i32, i32
  }
  func.func @transform_1(%arg0: i32, %arg1: i32) -> (i32, i32, i32) {
    %c2_i32 = arith.constant 2 : i32
    %0 = arith.muli %arg1, %c2_i32 : i32
    %c1_i32 = arith.constant 1 : i32
    %1 = arith.subi %0, %c1_i32 : i32
    %c0_i32 = arith.constant 0 : i32
    %2 = arith.maxsi %1, %c0_i32 : i32
    %c0_i32_0 = arith.constant 0 : i32
    %c0_i32_1 = arith.constant 0 : i32
    return %arg0, %c0_i32_0, %2 : i32, i32, i32
  }
  func.func @transform_2(%arg0: i32, %arg1: i32) -> (i32, i32, i32) {
    %c1_i32 = arith.constant 1 : i32
    %0 = arith.addi %arg1, %c1_i32 : i32
    %c2_i32 = arith.constant 2 : i32
    %1 = arith.muli %0, %c2_i32 : i32
    %c3_i32 = arith.constant 3 : i32
    %2 = arith.minsi %1, %c3_i32 : i32
    %c0_i32 = arith.constant 0 : i32
    %c0_i32_0 = arith.constant 0 : i32
    return %arg0, %c0_i32, %2 : i32, i32, i32
  }
  func.func @transform_3(%arg0: i32, %arg1: i32) -> (i32, i32) {
    %c0_i32 = arith.constant 0 : i32
    %c0_i32_0 = arith.constant 0 : i32
    %c0_i32_1 = arith.constant 0 : i32
    return %c0_i32, %c0_i32_0 : i32, i32
  }
  func.func @transform_4(%arg0: i32, %arg1: i32) -> (i32, i32) {
    %c0_i32 = arith.constant 0 : i32
    %c0_i32_0 = arith.constant 0 : i32
    %c0_i32_1 = arith.constant 0 : i32
    return %c0_i32, %c0_i32_0 : i32, i32
  }
  func.func @transform_5(%arg0: i32, %arg1: i32) -> (i32, i32) {
    %c0_i32 = arith.constant 0 : i32
    %c0_i32_0 = arith.constant 0 : i32
    %c0_i32_1 = arith.constant 0 : i32
    return %c0_i32, %c0_i32_0 : i32, i32
  }
  func.func @transform_6(%arg0: i32, %arg1: i32) -> (i32, i32) {
    %c0_i32 = arith.constant 0 : i32
    %c0_i32_0 = arith.constant 0 : i32
    %c0_i32_1 = arith.constant 0 : i32
    return %c0_i32, %c0_i32_0 : i32, i32
  }
  func.func @transform_7(%arg0: i32, %arg1: i32) -> (i32, i32, i32) {
    %c0_i32 = arith.constant 0 : i32
    %c0_i32_0 = arith.constant 0 : i32
    return %arg0, %c0_i32, %arg1 : i32, i32, i32
  }
}

</mosaic_0001>

<llo_original>
// kernel: tpu_custom_call.1
$region0: #{tpu_custom_call.1}
  #allocation0 [shape = 'u32[]', space=smem, size = 0x4, offset = 0x4, fixed_abs, tag = 'smem constant byte address 0x4 - core index']
  #allocation1 [shape = 'u32[144,128]{1,0:T(1,128)}', space=vmem, size = 0x12000, scoped, tag = 'internal scratch']
  %s0 = inlined_call_operand.hbm [shape: f32[2,64,512], index: 0, kind: input, shape index: {}]
  %s1 = inlined_call_operand.hbm [shape: f32[2,64,512], index: 1, kind: input, shape index: {}]
  %s2 = inlined_call_operand.hbm [shape: f32[2,64,512], index: 2, kind: input, shape index: {}]
  %s3 = inlined_call_operand.vmem [shape: bf16[64,192], index: 3, kind: input, shape index: {}]
  %s4 = inlined_call_operand.vmem [shape: f32[64,1], index: 4, kind: input, shape index: {}]
  %s5 = inlined_call_operand.vmem [shape: bf16[64,64], index: 5, kind: input, shape index: {}]
  %s6 = inlined_call_operand.vmem [shape: f32[64,1], index: 6, kind: input, shape index: {}]
  %s7 = inlined_call_operand.hbm [shape: f32[2,64,512], index: 7, kind: output, shape index: {}]
  %s8 = sld [smem:[#allocation0]]
  $region73: #{tpu_custom_call.1} parent=0
    _
  %s10 = ssub.s32 1, %s8
  %s11 = scalar_select 0, %s10, %s8
  $region1: #{tpu_custom_call.1} parent=0
    #allocation2 [shape = 'u8[131072]{0}', space=vmem, size = 0x20000, scoped, tag = 'input window, operand 0']
    #allocation3 [shape = 's32[2]{0}', space=sflag, size = 0x8, scoped, tag = 'scoped memory for tpu_custom_call.1']
    #allocation4 [shape = 's32[2]{0}', space=sflag, size = 0x8, scoped, tag = 'scoped memory for tpu_custom_call.1']
    #allocation5 [shape = 'u8[65536]{0}', space=vmem, size = 0x10000, scoped, tag = 'input window, operand 1']
    #allocation6 [shape = 's32[2]{0}', space=sflag, size = 0x8, scoped, tag = 'scoped memory for tpu_custom_call.1']
    #allocation7 [shape = 'u8[65536]{0}', space=vmem, size = 0x10000, scoped, tag = 'input window, operand 2']
    #allocation8 [shape = 'u8[131072]{0}', space=vmem, size = 0x20000, scoped, tag = 'output window, operand 0']
    %12 = vsyncpa [#allocation3], 0
    %s13 = scalar_lea.sflag [#allocation3], 1
    %14 = vsyncpa %s13, 0
    %15 = vsyncpa [#allocation6], 0
    %s16 = scalar_lea.sflag [#allocation6], 1
    %17 = vsyncpa %s16, 0
    %18 = vsyncpa [#allocation4], 0
    %s19 = scalar_lea.sflag [#allocation4], 1
    %20 = vsyncpa %s19, 0
    loop: start=0, step=1, limit=6
    $region2: #{tpu_custom_call.1} parent=1 // loop_pre_header
      _
    $region3: #{tpu_custom_call.1} parent=1 // loop_header
      %s22 = sphi 0, %s26
      %p23 = scmp.ge.s32.totalorder %s22, 6
      %s29 = sphi 0, %s41
      %s30 = sphi 0, %s37
      %s31 = sphi 0, %s29
      %s32 = sphi 0, %s30
      %s33 = sphi 0, %s31
      %s34 = sphi 0, %s32
      %s46 = sphi 0, %s48
      %s49 = sphi 0, %s46
      %s50 = sphi 0, %s49
      %s66 = sphi 0, %s50
      %s82 = sphi 0, %s84
      %s85 = sphi 0, %s82
      %s86 = sphi 0, %s85
      %s102 = sphi 0, %s86
      %s118 = sphi 0, %s120
      %s121 = sphi 0, %s118
      %s122 = sphi 0, %s121
      %s138 = sphi 0, %s122
      %s142 = sphi 0, %s142
      %s144 = sphi 0, %s142
      %s145 = sphi 0, %s144
      %s159 = sphi 0, %s145
      %s163 = sphi 0, %s163
      %s165 = sphi 0, %s163
      %s166 = sphi 0, %s165
      %s180 = sphi 0, %s166
      %s184 = sphi 0, %s184
      %s186 = sphi 0, %s184
      %s187 = sphi 0, %s186
      %s201 = sphi 0, %s187
      %s205 = sphi 0, %s205
      %s207 = sphi 0, %s205
      %s208 = sphi 0, %s207
      %s222 = sphi 0, %s208
      %s230 = sphi 0, %s232
      %s233 = sphi 0, %s230
      %s234 = sphi 0, %s233
      %s250 = sphi 0, %s234
    $region4: #{tpu_custom_call.1} parent=1 // loop_header_branch
      %25 = sbr.rel (%p23) target = $region8
    $region5: #{tpu_custom_call.1} parent=1 // loop_body
      %s27 = ssub.s32 %s22, 1
      %s28 = ssub.s32 %s22, 2
      %s35 = sadd.s32 1, %s30
      %p36 = scmp.ge.s32.totalorder %s35, 2
      %s37 = scalar_select %p36, 0, %s35
      %s38 = sadd.s32 1, %s29
      %s39 = scalar_select %p36, %s38, %s29
      %p40 = scmp.ge.s32.totalorder %s39, 2
      %s41 = scalar_select %p40, 0, %s39
      %s42 = ssub.s32 %s29, %s41
      %s43 = ssub.s32 %s30, %s37
      %s44 = sor.u32 %s42, %s43
      %p45 = scmp.eq.s32.totalorder %s44, 0
      %s47 = sadd.s32 %s46, 1
      %s48 = scalar_select %p45, %s46, %s47
      %p51 = pneg %p45
      %p52 = scmp.eq.s32.totalorder %s22, 3
      %p53 = por %p51, %p52
      %p54 = scmp.ne.s32.totalorder %s46, %s49
      %p55 = scmp.eq.s32.totalorder %s22, 0
      %p56 = por %p54, %p55
      %p57 = scmp.ne.s32.totalorder %s46, %s49
      %p58 = scmp.eq.s32.totalorder %s27, 3
      %p59 = por %p57, %p58
      %p60 = scmp.ne.s32.totalorder %s49, %s50
      %p61 = scmp.eq.s32.totalorder %s27, 0
      %p62 = por %p60, %p61
      %p63 = scmp.ne.s32.totalorder %s49, %s50
      %p64 = scmp.eq.s32.totalorder %s28, 3
      %p65 = por %p63, %p64
      %p67 = scmp.ne.s32.totalorder %s50, %s66
      %p68 = scmp.eq.s32.totalorder %s28, 0
      %p69 = por %p67, %p68
      %s70 = smul.u32 %s30, 2
      %s71 = ssub.s32 %s70, 1
      %p72 = scmp.gt.s32.totalorder %s71, 0
      %s73 = scalar_select %p72, %s71, 0
      %s74 = smul.u32 %s37, 2
      %s75 = ssub.s32 %s74, 1
      %p76 = scmp.gt.s32.totalorder %s75, 0
      %s77 = scalar_select %p76, %s75, 0
      %s78 = ssub.s32 %s29, %s41
      %s79 = ssub.s32 %s73, %s77
      %s80 = sor.u32 %s78, %s79
      %p81 = scmp.eq.s32.totalorder %s80, 0
      %s83 = sadd.s32 %s82, 1
      %s84 = scalar_select %p81, %s82, %s83
      %p87 = pneg %p81
      %p88 = scmp.eq.s32.totalorder %s22, 3
      %p89 = por %p87, %p88
      %p90 = scmp.ne.s32.totalorder %s82, %s85
      %p91 = scmp.eq.s32.totalorder %s22, 0
      %p92 = por %p90, %p91
      %p93 = scmp.ne.s32.totalorder %s82, %s85
      %p94 = scmp.eq.s32.totalorder %s27, 3
      %p95 = por %p93, %p94
      %p96 = scmp.ne.s32.totalorder %s85, %s86
      %p97 = scmp.eq.s32.totalorder %s27, 0
      %p98 = por %p96, %p97
      %p99 = scmp.ne.s32.totalorder %s85, %s86
      %p100 = scmp.eq.s32.totalorder %s28, 3
      %p101 = por %p99, %p100
      %p103 = scmp.ne.s32.totalorder %s86, %s102
      %p104 = scmp.eq.s32.totalorder %s28, 0
      %p105 = por %p103, %p104
      %s106 = sadd.s32 %s30, 1
      %s107 = smul.u32 %s106, 2
      %p108 = scmp.lt.s32.totalorder %s107, 3
      %s109 = scalar_select %p108, %s107, 3
      %s110 = sadd.s32 %s37, 1
      %s111 = smul.u32 %s110, 2
      %p112 = scmp.lt.s32.totalorder %s111, 3
      %s113 = scalar_select %p112, %s111, 3
      %s114 = ssub.s32 %s29, %s41
      %s115 = ssub.s32 %s109, %s113
      %s116 = sor.u32 %s114, %s115
      %p117 = scmp.eq.s32.totalorder %s116, 0
      %s119 = sadd.s32 %s118, 1
      %s120 = scalar_select %p117, %s118, %s119
      %p123 = pneg %p117
      %p124 = scmp.eq.s32.totalorder %s22, 3
      %p125 = por %p123, %p124
      %p126 = scmp.ne.s32.totalorder %s118, %s121
      %p127 = scmp.eq.s32.totalorder %s22, 0
      %p128 = por %p126, %p127
      %p129 = scmp.ne.s32.totalorder %s118, %s121
      %p130 = scmp.eq.s32.totalorder %s27, 3
      %p131 = por %p129, %p130
      %p132 = scmp.ne.s32.totalorder %s121, %s122
      %p133 = scmp.eq.s32.totalorder %s27, 0
      %p134 = por %p132, %p133
      %p135 = scmp.ne.s32.totalorder %s121, %s122
      %p136 = scmp.eq.s32.totalorder %s28, 3
      %p137 = por %p135, %p136
      %p139 = scmp.ne.s32.totalorder %s122, %s138
      %p140 = scmp.eq.s32.totalorder %s28, 0
      %p141 = por %p139, %p140
      %s143 = sadd.s32 %s142, 1
      %p146 = scmp.eq.s32.totalorder %s22, 3
      %p147 = scmp.ne.s32.totalorder %s142, %s144
      %p148 = scmp.eq.s32.totalorder %s22, 0
      %p149 = por %p147, %p148
      %p150 = scmp.ne.s32.totalorder %s142, %s144
      %p151 = scmp.eq.s32.totalorder %s27, 3
      %p152 = por %p150, %p151
      %p153 = scmp.ne.s32.totalorder %s144, %s145
      %p154 = scmp.eq.s32.totalorder %s27, 0
      %p155 = por %p153, %p154
      %p156 = scmp.ne.s32.totalorder %s144, %s145
      %p157 = scmp.eq.s32.totalorder %s28, 3
      %p158 = por %p156, %p157
      %p160 = scmp.ne.s32.totalorder %s145, %s159
      %p161 = scmp.eq.s32.totalorder %s28, 0
      %p162 = por %p160, %p161
      %s164 = sadd.s32 %s163, 1
      %p167 = scmp.eq.s32.totalorder %s22, 3
      %p168 = scmp.ne.s32.totalorder %s163, %s165
      %p169 = scmp.eq.s32.totalorder %s22, 0
      %p170 = por %p168, %p169
      %p171 = scmp.ne.s32.totalorder %s163, %s165
      %p172 = scmp.eq.s32.totalorder %s27, 3
      %p173 = por %p171, %p172
      %p174 = scmp.ne.s32.totalorder %s165, %s166
      %p175 = scmp.eq.s32.totalorder %s27, 0
      %p176 = por %p174, %p175
      %p177 = scmp.ne.s32.totalorder %s165, %s166
      %p178 = scmp.eq.s32.totalorder %s28, 3
      %p179 = por %p177, %p178
      %p181 = scmp.ne.s32.totalorder %s166, %s180
      %p182 = scmp.eq.s32.totalorder %s28, 0
      %p183 = por %p181, %p182
      %s185 = sadd.s32 %s184, 1
      %p188 = scmp.eq.s32.totalorder %s22, 3
      %p189 = scmp.ne.s32.totalorder %s184, %s186
      %p190 = scmp.eq.s32.totalorder %s22, 0
      %p191 = por %p189, %p190
      %p192 = scmp.ne.s32.totalorder %s184, %s186
      %p193 = scmp.eq.s32.totalorder %s27, 3
      %p194 = por %p192, %p193
      %p195 = scmp.ne.s32.totalorder %s186, %s187
      %p196 = scmp.eq.s32.totalorder %s27, 0
      %p197 = por %p195, %p196
      %p198 = scmp.ne.s32.totalorder %s186, %s187
      %p199 = scmp.eq.s32.totalorder %s28, 3
      %p200 = por %p198, %p199
      %p202 = scmp.ne.s32.totalorder %s187, %s201
      %p203 = scmp.eq.s32.totalorder %s28, 0
      %p204 = por %p202, %p203
      %s206 = sadd.s32 %s205, 1
      %p209 = scmp.eq.s32.totalorder %s22, 3
      %p210 = scmp.ne.s32.totalorder %s205, %s207
      %p211 = scmp.eq.s32.totalorder %s22, 0
      %p212 = por %p210, %p211
      %p213 = scmp.ne.s32.totalorder %s205, %s207
      %p214 = scmp.eq.s32.totalorder %s27, 3
      %p215 = por %p213, %p214
      %p216 = scmp.ne.s32.totalorder %s207, %s208
      %p217 = scmp.eq.s32.totalorder %s27, 0
      %p218 = por %p216, %p217
      %p219 = scmp.ne.s32.totalorder %s207, %s208
      %p220 = scmp.eq.s32.totalorder %s28, 3
      %p221 = por %p219, %p220
      %p223 = scmp.ne.s32.totalorder %s208, %s222
      %p224 = scmp.eq.s32.totalorder %s28, 0
      %p225 = por %p223, %p224
      %s226 = ssub.s32 %s29, %s41
      %s227 = ssub.s32 %s30, %s37
      %s228 = sor.u32 %s226, %s227
      %p229 = scmp.eq.s32.totalorder %s228, 0
      %s231 = sadd.s32 %s230, 1
      %s232 = scalar_select %p229, %s230, %s231
      %p235 = pneg %p229
      %p236 = scmp.eq.s32.totalorder %s22, 3
      %p237 = por %p235, %p236
      %p238 = scmp.ne.s32.totalorder %s230, %s233
      %p239 = scmp.eq.s32.totalorder %s22, 0
      %p240 = por %p238, %p239
      %p241 = scmp.ne.s32.totalorder %s230, %s233
      %p242 = scmp.eq.s32.totalorder %s27, 3
      %p243 = por %p241, %p242
      %p244 = scmp.ne.s32.totalorder %s233, %s234
      %p245 = scmp.eq.s32.totalorder %s27, 0
      %p246 = por %p244, %p245
      %p247 = scmp.ne.s32.totalorder %s233, %s234
      %p248 = scmp.eq.s32.totalorder %s28, 3
      %p249 = por %p247, %p248
      %p251 = scmp.ne.s32.totalorder %s234, %s250
      %p252 = scmp.eq.s32.totalorder %s28, 0
      %p253 = por %p251, %p252
      %p254 = scmp.le.s32.totalorder 1, %s22
      %p255 = scmp.lt.s32.totalorder %s22, 5
      %p256 = pnand %p254, %p255
      %p257 = pneg %p256
      // Predicated region
      $region9: #{tpu_custom_call.1} parent=5 // pred_check
        _
      $region10: #{tpu_custom_call.1} parent=5 // pred_check_branch
        %259 = sbr.rel (%p256) target = $region12
      $region11: #{tpu_custom_call.1} parent=5 // pred_region
        %s260 = ssub.s32 %s22, 1
        // Predicated region
        $region13: #{tpu_custom_call.1} parent=11 // pred_check
          %p261 = pneg %p155
        $region14: #{tpu_custom_call.1} parent=11 // pred_check_branch
          %263 = sbr.rel (%p261) target = $region16
        $region15: #{tpu_custom_call.1} parent=11 // pred_region
          _
        $region16: #{tpu_custom_call.1} parent=11 // pred_fallthru
          _
        // Predicated region
        $region17: #{tpu_custom_call.1} parent=11 // pred_check
          %p264 = pneg %p176
        $region18: #{tpu_custom_call.1} parent=11 // pred_check_branch
          %266 = sbr.rel (%p264) target = $region20
        $region19: #{tpu_custom_call.1} parent=11 // pred_region
          _
        $region20: #{tpu_custom_call.1} parent=11 // pred_fallthru
          _
        // Predicated region
        $region21: #{tpu_custom_call.1} parent=11 // pred_check
          %p267 = pneg %p197
        $region22: #{tpu_custom_call.1} parent=11 // pred_check_branch
          %269 = sbr.rel (%p267) target = $region24
        $region23: #{tpu_custom_call.1} parent=11 // pred_region
          _
        $region24: #{tpu_custom_call.1} parent=11 // pred_fallthru
          _
        // Predicated region
        $region25: #{tpu_custom_call.1} parent=11 // pred_check
          %p270 = pneg %p218
        $region26: #{tpu_custom_call.1} parent=11 // pred_check_branch
          %272 = sbr.rel (%p270) target = $region28
        $region27: #{tpu_custom_call.1} parent=11 // pred_region
          _
        $region28: #{tpu_custom_call.1} parent=11 // pred_fallthru
          _
      $region12: #{tpu_custom_call.1} parent=5 // pred_fallthru
        _
      %p273 = scmp.lt.s32.totalorder %s22, 4
      // Predicated region
      $region29: #{tpu_custom_call.1} parent=5 // pred_check
        %p274 = pneg %p273
      $region30: #{tpu_custom_call.1} parent=5 // pred_check_branch
        %276 = sbr.rel (%p274) target = $region32
      $region31: #{tpu_custom_call.1} parent=5 // pred_region
        // Predicated region
        $region33: #{tpu_custom_call.1} parent=31 // pred_check
          %p277 = pneg %p56
        $region34: #{tpu_custom_call.1} parent=31 // pred_check_branch
          %279 = sbr.rel (%p277) target = $region36
        $region35: #{tpu_custom_call.1} parent=31 // pred_region
          %s280 = sand.u32 %s46, 1
          %s281 = scalar_lea.sflag [#allocation3], %s280
          %s282 = sand.u32 %s46, 1
          %s283 = smul.addr %s282, 128
          %s284 = scalar_lea.vmem [#allocation2], %s283
          %s285 = smul.u32 2, %s30
          %s287 = ssub.s32 2048, 2048
          %288 = vsyncadd %s281, %s287
          %s289 = smul.addr %s29, 32
          %s290 = sadd.s32 %s285, %s289
          %s291 = smul.addr %s290, 128
          %s292 = scalar_lea.hbm %s0, %s291
          %s293 = sshll.u32 %s284, 4
          %s294 = int_to_ptr.vmem [resolvable:$true] %s293
          %299 = dma.hbm_to_vmem [thread:$0]  %s292, 2048, %s294, %s281, 512, 256, 16
        $region36: #{tpu_custom_call.1} parent=31 // pred_fallthru
          _
        // Predicated region
        $region37: #{tpu_custom_call.1} parent=31 // pred_check
          %p300 = pneg %p92
        $region38: #{tpu_custom_call.1} parent=31 // pred_check_branch
          %302 = sbr.rel (%p300) target = $region40
        $region39: #{tpu_custom_call.1} parent=31 // pred_region
          %s303 = sand.u32 %s22, 1
          %s304 = scalar_lea.sflag [#allocation6], %s303
          %s305 = sand.u32 %s82, 1
          %s306 = smul.addr %s305, 64
          %s307 = scalar_lea.vmem [#allocation5], %s306
          %s308 = smul.u32 %s30, 2
          %s309 = ssub.s32 %s308, 1
          %p310 = scmp.gt.s32.totalorder %s309, 0
          %s311 = scalar_select %p310, %s309, 0
          %s313 = ssub.s32 1024, 1024
          %314 = vsyncadd %s304, %s313
          %s315 = smul.addr %s29, 32
          %s316 = sadd.s32 %s311, %s315
          %s317 = smul.addr %s316, 128
          %s318 = scalar_lea.hbm %s1, %s317
          %s319 = sshll.u32 %s307, 4
          %s320 = int_to_ptr.vmem [resolvable:$true] %s319
          %325 = dma.hbm_to_vmem [thread:$0]  %s318, 1024, %s320, %s304, 512, 128, 8
        $region40: #{tpu_custom_call.1} parent=31 // pred_fallthru
          _
        // Predicated region
        $region41: #{tpu_custom_call.1} parent=31 // pred_check
          %p326 = pneg %p128
        $region42: #{tpu_custom_call.1} parent=31 // pred_check_branch
          %328 = sbr.rel (%p326) target = $region44
        $region43: #{tpu_custom_call.1} parent=31 // pred_region
          %s329 = sand.u32 %s22, 1
          %s330 = scalar_lea.sflag [#allocation6], %s329
          %s331 = sand.u32 %s118, 1
          %s332 = smul.addr %s331, 64
          %s333 = scalar_lea.vmem [#allocation7], %s332
          %s334 = sadd.s32 %s30, 1
          %s335 = smul.u32 %s334, 2
          %p336 = scmp.lt.s32.totalorder %s335, 3
          %s337 = scalar_select %p336, %s335, 3
          %s339 = ssub.s32 1024, 1024
          %340 = vsyncadd %s330, %s339
          %s341 = smul.addr %s29, 32
          %s342 = sadd.s32 %s337, %s341
          %s343 = smul.addr %s342, 128
          %s344 = scalar_lea.hbm %s2, %s343
          %s345 = sshll.u32 %s333, 4
          %s346 = int_to_ptr.vmem [resolvable:$true] %s345
          %351 = dma.hbm_to_vmem [thread:$0]  %s344, 1024, %s346, %s330, 512, 128, 8
        $region44: #{tpu_custom_call.1} parent=31 // pred_fallthru
          _
      $region32: #{tpu_custom_call.1} parent=5 // pred_fallthru
        _
      %p352 = scmp.le.s32.totalorder 1, %s22
      %p353 = scmp.lt.s32.totalorder %s22, 5
      %p354 = pnand %p352, %p353
      %p355 = pneg %p354
      // Predicated region
      $region45: #{tpu_custom_call.1} parent=5 // pred_check
        _
      $region46: #{tpu_custom_call.1} parent=5 // pred_check_branch
        %357 = sbr.rel (%p354) target = $region48
      $region47: #{tpu_custom_call.1} parent=5 // pred_region
        %s358 = ssub.s32 %s22, 1
        %s359 = sand.u32 %s49, 1
        %s360 = scalar_lea.sflag [#allocation3], %s359
        %s361 = sand.u32 %s49, 1
        %s362 = smul.addr %s361, 128
        %s363 = scalar_lea.vmem [#allocation2], %s362
        // Predicated region
        $region49: #{tpu_custom_call.1} parent=47 // pred_check
          %p364 = pneg %p62
        $region50: #{tpu_custom_call.1} parent=47 // pred_check_branch
          %366 = sbr.rel (%p364) target = $region52
        $region51: #{tpu_custom_call.1} parent=47 // pred_region
          %367 = dma.done %s360, 2048
        $region52: #{tpu_custom_call.1} parent=47 // pred_fallthru
          _
        %s368 = sand.u32 %s27, 1
        %s369 = scalar_lea.sflag [#allocation6], %s368
        %s370 = sand.u32 %s85, 1
        %s371 = smul.addr %s370, 64
        %s372 = scalar_lea.vmem [#allocation5], %s371
        // Predicated region
        $region53: #{tpu_custom_call.1} parent=47 // pred_check
          %p373 = pneg %p98
        $region54: #{tpu_custom_call.1} parent=47 // pred_check_branch
          %375 = sbr.rel (%p373) target = $region56
        $region55: #{tpu_custom_call.1} parent=47 // pred_region
          %376 = dma.done %s369, 1024
        $region56: #{tpu_custom_call.1} parent=47 // pred_fallthru
          _
        %s377 = sand.u32 %s27, 1
        %s378 = scalar_lea.sflag [#allocation6], %s377
        %s379 = sand.u32 %s121, 1
        %s380 = smul.addr %s379, 64
        %s381 = scalar_lea.vmem [#allocation7], %s380
        // Predicated region
        $region57: #{tpu_custom_call.1} parent=47 // pred_check
          %p382 = pneg %p134
        $region58: #{tpu_custom_call.1} parent=47 // pred_check_branch
          %384 = sbr.rel (%p382) target = $region60
        $region59: #{tpu_custom_call.1} parent=47 // pred_region
          %385 = dma.done %s378, 1024
        $region60: #{tpu_custom_call.1} parent=47 // pred_fallthru
          _
        %s386 = sand.u32 %s49, 1
        %s387 = scalar_lea.sflag [#allocation3], %s386
        %s388 = sand.u32 %s49, 1
        %s389 = smul.addr %s388, 128
        %s390 = scalar_lea.vmem [#allocation2], %s389
        %p391 = pneg %p62
        %p392 = pneg %p59
        %s393 = sand.u32 %s27, 1
        %s394 = scalar_lea.sflag [#allocation6], %s393
        %s395 = sand.u32 %s85, 1
        %s396 = smul.addr %s395, 64
        %s397 = scalar_lea.vmem [#allocation5], %s396
        %p398 = pneg %p98
        %p399 = pneg %p95
        %s400 = sand.u32 %s27, 1
        %s401 = scalar_lea.sflag [#allocation6], %s400
        %s402 = sand.u32 %s121, 1
        %s403 = smul.addr %s402, 64
        %s404 = scalar_lea.vmem [#allocation7], %s403
        %p405 = pneg %p134
        %p406 = pneg %p131
        %p407 = pneg %p155
        %p408 = pneg %p152
        %p409 = pneg %p176
        %p410 = pneg %p173
        %p411 = pneg %p197
        %p412 = pneg %p194
        %p413 = pneg %p218
        %p414 = pneg %p215
        %p415 = pneg %p246
        %p416 = pneg %p243
        %s417 = sand.u32 %s233, 1
        %s418 = scalar_lea.sflag [#allocation4], %s417
        %s419 = sand.u32 %s233, 1
        %s420 = smul.addr %s419, 128
        %s421 = scalar_lea.vmem [#allocation8], %s420
        %s422 = smul.u32 2, %s32
        %s423 = smul.u32 %s32, 2
        %s424 = ssub.s32 %s423, 1
        %p425 = scmp.gt.s32.totalorder %s424, 0
        %s426 = scalar_select %p425, %s424, 0
        %s427 = sadd.s32 %s32, 1
        %s428 = smul.u32 %s427, 2
        %p429 = scmp.lt.s32.totalorder %s428, 3
        %s430 = scalar_select %p429, %s428, 3
        %s431 = smul.u32 2, %s32
        %v433 = vld [vmem:[%s363] sm:$0xff]
        %v434 = vld [vmem:[%s363 + $0x8] sm:$0xff]
        %v435 = vld [vmem:[%s363 + $0x10] sm:$0xff]
        %v436 = vld [vmem:[%s363 + $0x18] sm:$0xff]
        %v437 = vld [vmem:[%s363 + $0x20] sm:$0xff]
        %v438 = vld [vmem:[%s363 + $0x28] sm:$0xff]
        %v439 = vld [vmem:[%s363 + $0x30] sm:$0xff]
        %v440 = vld [vmem:[%s363 + $0x38] sm:$0xff]
        %v441 = vld [vmem:[%s363 + $0x40] sm:$0xff]
        %v442 = vld [vmem:[%s363 + $0x48] sm:$0xff]
        %v443 = vld [vmem:[%s363 + $0x50] sm:$0xff]
        %v444 = vld [vmem:[%s363 + $0x58] sm:$0xff]
        %v445 = vld [vmem:[%s363 + $0x60] sm:$0xff]
        %v446 = vld [vmem:[%s363 + $0x68] sm:$0xff]
        %v447 = vld [vmem:[%s363 + $0x70] sm:$0xff]
        %v448 = vld [vmem:[%s363 + $0x78] sm:$0xff]
        %v449 = vld [vmem:[%s372] sm:$0xff]
        %v450 = vld [vmem:[%s372 + $0x8] sm:$0xff]
        %v451 = vld [vmem:[%s372 + $0x10] sm:$0xff]
        %v452 = vld [vmem:[%s372 + $0x18] sm:$0xff]
        %v453 = vld [vmem:[%s372 + $0x20] sm:$0xff]
        %v454 = vld [vmem:[%s372 + $0x28] sm:$0xff]
        %v455 = vld [vmem:[%s372 + $0x30] sm:$0xff]
        %v456 = vld [vmem:[%s372 + $0x38] sm:$0xff]
        %v457 = vld [vmem:[%s381] sm:$0xff]
        %v458 = vld [vmem:[%s381 + $0x8] sm:$0xff]
        %v459 = vld [vmem:[%s381 + $0x10] sm:$0xff]
        %v460 = vld [vmem:[%s381 + $0x18] sm:$0xff]
        %v461 = vld [vmem:[%s381 + $0x20] sm:$0xff]
        %v462 = vld [vmem:[%s381 + $0x28] sm:$0xff]
        %v463 = vld [vmem:[%s381 + $0x30] sm:$0xff]
        %v464 = vld [vmem:[%s381 + $0x38] sm:$0xff]
        %p465 = scmp.eq.s32.totalorder %s32, 0
        %s466 = scalar_select %p465, 1, 0
        %v467 = vstv %s466
        %vm468 = vcmp.eq.s32.totalorder %v467, 1
        %v469 = vsel %vm468, 0.0, %v449
        %v470 = vsel %vm468, 0.0, %v450
        %v471 = vsel %vm468, 0.0, %v451
        %v472 = vsel %vm468, 0.0, %v452
        %v473 = vsel %vm468, 0.0, %v453
        %v474 = vsel %vm468, 0.0, %v454
        %v475 = vsel %vm468, 0.0, %v455
        %v476 = vsel %vm468, 0.0, %v456
        %p477 = scmp.eq.s32.totalorder %s32, 1
        %s478 = scalar_select %p477, 1, 0
        %v479 = vstv %s478
        %vm480 = vcmp.eq.s32.totalorder %v479, 1
        %v481 = vsel %vm480, 0.0, %v457
        %v482 = vsel %vm480, 0.0, %v458
        %v483 = vsel %vm480, 0.0, %v459
        %v484 = vsel %vm480, 0.0, %v460
        %v485 = vsel %vm480, 0.0, %v461
        %v486 = vsel %vm480, 0.0, %v462
        %v487 = vsel %vm480, 0.0, %v463
        %v488 = vsel %vm480, 0.0, %v464
        %497 = vrot.lane.b32.xlu0 %v469, 3
        %v498 = vpop.permute.xlu0 %497
        %499 = vrot.lane.b32.xlu0 %v470, 3
        %v500 = vpop.permute.xlu0 %499
        %501 = vrot.lane.b32.xlu0 %v471, 3
        %v502 = vpop.permute.xlu0 %501
        %503 = vrot.lane.b32.xlu0 %v472, 3
        %v504 = vpop.permute.xlu0 %503
        %505 = vrot.lane.b32.xlu0 %v473, 3
        %v506 = vpop.permute.xlu0 %505
        %507 = vrot.lane.b32.xlu0 %v474, 3
        %v508 = vpop.permute.xlu0 %507
        %509 = vrot.lane.b32.xlu0 %v475, 3
        %v510 = vpop.permute.xlu0 %509
        %511 = vrot.lane.b32.xlu0 %v476, 3
        %v512 = vpop.permute.xlu0 %511
        %537 = vrot.lane.b32.xlu0 %v433, 3
        %v538 = vpop.permute.xlu0 %537
        %539 = vrot.lane.b32.xlu0 %v434, 3
        %v540 = vpop.permute.xlu0 %539
        %541 = vrot.lane.b32.xlu0 %v435, 3
        %v542 = vpop.permute.xlu0 %541
        %543 = vrot.lane.b32.xlu0 %v436, 3
        %v544 = vpop.permute.xlu0 %543
        %545 = vrot.lane.b32.xlu0 %v437, 3
        %v546 = vpop.permute.xlu0 %545
        %547 = vrot.lane.b32.xlu0 %v438, 3
        %v548 = vpop.permute.xlu0 %547
        %549 = vrot.lane.b32.xlu0 %v439, 3
        %v550 = vpop.permute.xlu0 %549
        %551 = vrot.lane.b32.xlu0 %v440, 3
        %v552 = vpop.permute.xlu0 %551
        %553 = vrot.lane.b32.xlu0 %v441, 3
        %v554 = vpop.permute.xlu0 %553
        %555 = vrot.lane.b32.xlu0 %v442, 3
        %v556 = vpop.permute.xlu0 %555
        %557 = vrot.lane.b32.xlu0 %v443, 3
        %v558 = vpop.permute.xlu0 %557
        %559 = vrot.lane.b32.xlu0 %v444, 3
        %v560 = vpop.permute.xlu0 %559
        %561 = vrot.lane.b32.xlu0 %v445, 3
        %v562 = vpop.permute.xlu0 %561
        %563 = vrot.lane.b32.xlu0 %v446, 3
        %v564 = vpop.permute.xlu0 %563
        %565 = vrot.lane.b32.xlu0 %v447, 3
        %v566 = vpop.permute.xlu0 %565
        %567 = vrot.lane.b32.xlu0 %v448, 3
        %v568 = vpop.permute.xlu0 %567
        %vm569 = vcmask 23552
        %v570 = vsel %vm569, %v538, %v540
        %v571 = vsel %vm569, %v542, %v544
        %v572 = vsel %vm569, %v546, %v548
        %v573 = vsel %vm569, %v550, %v552
        %v574 = vsel %vm569, %v554, %v556
        %v575 = vsel %vm569, %v558, %v560
        %v576 = vsel %vm569, %v562, %v564
        %v577 = vsel %vm569, %v566, %v568
        %610 = vrot.lane.b32.xlu0 %v481, 3
        %v611 = vpop.permute.xlu0 %610
        %612 = vrot.lane.b32.xlu0 %v482, 3
        %v613 = vpop.permute.xlu0 %612
        %614 = vrot.lane.b32.xlu0 %v483, 3
        %v615 = vpop.permute.xlu0 %614
        %616 = vrot.lane.b32.xlu0 %v484, 3
        %v617 = vpop.permute.xlu0 %616
        %618 = vrot.lane.b32.xlu0 %v485, 3
        %v619 = vpop.permute.xlu0 %618
        %620 = vrot.lane.b32.xlu0 %v486, 3
        %v621 = vpop.permute.xlu0 %620
        %622 = vrot.lane.b32.xlu0 %v487, 3
        %v623 = vpop.permute.xlu0 %622
        %624 = vrot.lane.b32.xlu0 %v488, 3
        %v625 = vpop.permute.xlu0 %624
        %v634 = vsel %vm569, %v498, %v538
        %v635 = vsel %vm569, %v500, %v542
        %v636 = vsel %vm569, %v502, %v546
        %v637 = vsel %vm569, %v504, %v550
        %v638 = vsel %vm569, %v506, %v554
        %v639 = vsel %vm569, %v508, %v558
        %v640 = vsel %vm569, %v510, %v562
        %v641 = vsel %vm569, %v512, %v566
        %v642 = vsel %vm569, %v540, %v611
        %v643 = vsel %vm569, %v544, %v613
        %v644 = vsel %vm569, %v548, %v615
        %v645 = vsel %vm569, %v552, %v617
        %v646 = vsel %vm569, %v556, %v619
        %v647 = vsel %vm569, %v560, %v621
        %v648 = vsel %vm569, %v564, %v623
        %v649 = vsel %vm569, %v568, %v625
        %vm650 = vcmp.gt.f32.partialorder %v634, 0.0
        %vm651 = vcmp.gt.f32.partialorder %v570, 0.0
        %vm652 = vcmp.gt.f32.partialorder %v642, 0.0
        %vm653 = vcmp.gt.f32.partialorder %v635, 0.0
        %vm654 = vcmp.gt.f32.partialorder %v571, 0.0
        %vm655 = vcmp.gt.f32.partialorder %v643, 0.0
        %vm656 = vcmp.gt.f32.partialorder %v636, 0.0
        %vm657 = vcmp.gt.f32.partialorder %v572, 0.0
        %vm658 = vcmp.gt.f32.partialorder %v644, 0.0
        %vm659 = vcmp.gt.f32.partialorder %v637, 0.0
        %vm660 = vcmp.gt.f32.partialorder %v573, 0.0
        %vm661 = vcmp.gt.f32.partialorder %v645, 0.0
        %vm662 = vcmp.gt.f32.partialorder %v638, 0.0
        %vm663 = vcmp.gt.f32.partialorder %v574, 0.0
        %vm664 = vcmp.gt.f32.partialorder %v646, 0.0
        %vm665 = vcmp.gt.f32.partialorder %v639, 0.0
        %vm666 = vcmp.gt.f32.partialorder %v575, 0.0
        %vm667 = vcmp.gt.f32.partialorder %v647, 0.0
        %vm668 = vcmp.gt.f32.partialorder %v640, 0.0
        %vm669 = vcmp.gt.f32.partialorder %v576, 0.0
        %vm670 = vcmp.gt.f32.partialorder %v648, 0.0
        %vm671 = vcmp.gt.f32.partialorder %v641, 0.0
        %vm672 = vcmp.gt.f32.partialorder %v577, 0.0
        %vm673 = vcmp.gt.f32.partialorder %v649, 0.0
        %v674 = vmul.f32 %v634, 0.2
        %v675 = vmul.f32 %v570, 0.2
        %v676 = vmul.f32 %v642, 0.2
        %v677 = vmul.f32 %v635, 0.2
        %v678 = vmul.f32 %v571, 0.2
        %v679 = vmul.f32 %v643, 0.2
        %v680 = vmul.f32 %v636, 0.2
        %v681 = vmul.f32 %v572, 0.2
        %v682 = vmul.f32 %v644, 0.2
        %v683 = vmul.f32 %v637, 0.2
        %v684 = vmul.f32 %v573, 0.2
        %v685 = vmul.f32 %v645, 0.2
        %v686 = vmul.f32 %v638, 0.2
        %v687 = vmul.f32 %v574, 0.2
        %v688 = vmul.f32 %v646, 0.2
        %v689 = vmul.f32 %v639, 0.2
        %v690 = vmul.f32 %v575, 0.2
        %v691 = vmul.f32 %v647, 0.2
        %v692 = vmul.f32 %v640, 0.2
        %v693 = vmul.f32 %v576, 0.2
        %v694 = vmul.f32 %v648, 0.2
        %v695 = vmul.f32 %v641, 0.2
        %v696 = vmul.f32 %v577, 0.2
        %v697 = vmul.f32 %v649, 0.2
        %v698 = vsel %vm650, %v634, %v674
        %v699 = vsel %vm651, %v570, %v675
        %v700 = vsel %vm652, %v642, %v676
        %v701 = vsel %vm653, %v635, %v677
        %v702 = vsel %vm654, %v571, %v678
        %v703 = vsel %vm655, %v643, %v679
        %v704 = vsel %vm656, %v636, %v680
        %v705 = vsel %vm657, %v572, %v681
        %v706 = vsel %vm658, %v644, %v682
        %v707 = vsel %vm659, %v637, %v683
        %v708 = vsel %vm660, %v573, %v684
        %v709 = vsel %vm661, %v645, %v685
        %v710 = vsel %vm662, %v638, %v686
        %v711 = vsel %vm663, %v574, %v687
        %v712 = vsel %vm664, %v646, %v688
        %v713 = vsel %vm665, %v639, %v689
        %v714 = vsel %vm666, %v575, %v690
        %v715 = vsel %vm667, %v647, %v691
        %v716 = vsel %vm668, %v640, %v692
        %v717 = vsel %vm669, %v576, %v693
        %v718 = vsel %vm670, %v648, %v694
        %v719 = vsel %vm671, %v641, %v695
        %v720 = vsel %vm672, %v577, %v696
        %v721 = vsel %vm673, %v649, %v697
        %746 = vrot.lane.b32.xlu0 %v698, 125
        %v747 = vpop.permute.xlu0 %746
        %748 = vrot.lane.b32.xlu0 %v699, 125
        %v749 = vpop.permute.xlu0 %748
        %750 = vrot.lane.b32.xlu0 %v700, 125
        %v751 = vpop.permute.xlu0 %750
        %752 = vrot.lane.b32.xlu0 %v701, 125
        %v753 = vpop.permute.xlu0 %752
        %754 = vrot.lane.b32.xlu0 %v702, 125
        %v755 = vpop.permute.xlu0 %754
        %756 = vrot.lane.b32.xlu0 %v703, 125
        %v757 = vpop.permute.xlu0 %756
        %758 = vrot.lane.b32.xlu0 %v704, 125
        %v759 = vpop.permute.xlu0 %758
        %760 = vrot.lane.b32.xlu0 %v705, 125
        %v761 = vpop.permute.xlu0 %760
        %762 = vrot.lane.b32.xlu0 %v706, 125
        %v763 = vpop.permute.xlu0 %762
        %764 = vrot.lane.b32.xlu0 %v707, 125
        %v765 = vpop.permute.xlu0 %764
        %766 = vrot.lane.b32.xlu0 %v708, 125
        %v767 = vpop.permute.xlu0 %766
        %768 = vrot.lane.b32.xlu0 %v709, 125
        %v769 = vpop.permute.xlu0 %768
        %770 = vrot.lane.b32.xlu0 %v710, 125
        %v771 = vpop.permute.xlu0 %770
        %772 = vrot.lane.b32.xlu0 %v711, 125
        %v773 = vpop.permute.xlu0 %772
        %774 = vrot.lane.b32.xlu0 %v712, 125
        %v775 = vpop.permute.xlu0 %774
        %776 = vrot.lane.b32.xlu0 %v713, 125
        %v777 = vpop.permute.xlu0 %776
        %778 = vrot.lane.b32.xlu0 %v714, 125
        %v779 = vpop.permute.xlu0 %778
        %780 = vrot.lane.b32.xlu0 %v715, 125
        %v781 = vpop.permute.xlu0 %780
        %782 = vrot.lane.b32.xlu0 %v716, 125
        %v783 = vpop.permute.xlu0 %782
        %784 = vrot.lane.b32.xlu0 %v717, 125
        %v785 = vpop.permute.xlu0 %784
        %786 = vrot.lane.b32.xlu0 %v718, 125
        %v787 = vpop.permute.xlu0 %786
        %788 = vrot.lane.b32.xlu0 %v719, 125
        %v789 = vpop.permute.xlu0 %788
        %790 = vrot.lane.b32.xlu0 %v720, 125
        %v791 = vpop.permute.xlu0 %790
        %792 = vrot.lane.b32.xlu0 %v721, 125
        %v793 = vpop.permute.xlu0 %792
        %vm794 = vcmask 1022976
        %v795 = vsel %vm794, %v747, %v749
        %v796 = vsel %vm794, %v749, %v751
        %v797 = vsel %vm794, %v753, %v755
        %v798 = vsel %vm794, %v755, %v757
        %v799 = vsel %vm794, %v759, %v761
        %v800 = vsel %vm794, %v761, %v763
        %v801 = vsel %vm794, %v765, %v767
        %v802 = vsel %vm794, %v767, %v769
        %v803 = vsel %vm794, %v771, %v773
        %v804 = vsel %vm794, %v773, %v775
        %v805 = vsel %vm794, %v777, %v779
        %v806 = vsel %vm794, %v779, %v781
        %v807 = vsel %vm794, %v783, %v785
        %v808 = vsel %vm794, %v785, %v787
        %v809 = vsel %vm794, %v789, %v791
        %v810 = vsel %vm794, %v791, %v793
        %827 = vrot.lane.b32.xlu0 %v698, 122
        %v828 = vpop.permute.xlu0 %827
        %829 = vrot.lane.b32.xlu0 %v699, 122
        %v830 = vpop.permute.xlu0 %829
        %831 = vrot.lane.b32.xlu0 %v700, 122
        %v832 = vpop.permute.xlu0 %831
        %833 = vrot.lane.b32.xlu0 %v701, 122
        %v834 = vpop.permute.xlu0 %833
        %835 = vrot.lane.b32.xlu0 %v702, 122
        %v836 = vpop.permute.xlu0 %835
        %837 = vrot.lane.b32.xlu0 %v703, 122
        %v838 = vpop.permute.xlu0 %837
        %839 = vrot.lane.b32.xlu0 %v704, 122
        %v840 = vpop.permute.xlu0 %839
        %841 = vrot.lane.b32.xlu0 %v705, 122
        %v842 = vpop.permute.xlu0 %841
        %843 = vrot.lane.b32.xlu0 %v706, 122
        %v844 = vpop.permute.xlu0 %843
        %845 = vrot.lane.b32.xlu0 %v707, 122
        %v846 = vpop.permute.xlu0 %845
        %847 = vrot.lane.b32.xlu0 %v708, 122
        %v848 = vpop.permute.xlu0 %847
        %849 = vrot.lane.b32.xlu0 %v709, 122
        %v850 = vpop.permute.xlu0 %849
        %851 = vrot.lane.b32.xlu0 %v710, 122
        %v852 = vpop.permute.xlu0 %851
        %853 = vrot.lane.b32.xlu0 %v711, 122
        %v854 = vpop.permute.xlu0 %853
        %855 = vrot.lane.b32.xlu0 %v712, 122
        %v856 = vpop.permute.xlu0 %855
        %857 = vrot.lane.b32.xlu0 %v713, 122
        %v858 = vpop.permute.xlu0 %857
        %859 = vrot.lane.b32.xlu0 %v714, 122
        %v860 = vpop.permute.xlu0 %859
        %861 = vrot.lane.b32.xlu0 %v715, 122
        %v862 = vpop.permute.xlu0 %861
        %863 = vrot.lane.b32.xlu0 %v716, 122
        %v864 = vpop.permute.xlu0 %863
        %865 = vrot.lane.b32.xlu0 %v717, 122
        %v866 = vpop.permute.xlu0 %865
        %867 = vrot.lane.b32.xlu0 %v718, 122
        %v868 = vpop.permute.xlu0 %867
        %869 = vrot.lane.b32.xlu0 %v719, 122
        %v870 = vpop.permute.xlu0 %869
        %871 = vrot.lane.b32.xlu0 %v720, 122
        %v872 = vpop.permute.xlu0 %871
        %873 = vrot.lane.b32.xlu0 %v721, 122
        %v874 = vpop.permute.xlu0 %873
        %vm875 = vcmask 998400
        %v876 = vsel %vm875, %v828, %v830
        %v877 = vsel %vm875, %v830, %v832
        %v878 = vsel %vm875, %v834, %v836
        %v879 = vsel %vm875, %v836, %v838
        %v880 = vsel %vm875, %v840, %v842
        %v881 = vsel %vm875, %v842, %v844
        %v882 = vsel %vm875, %v846, %v848
        %v883 = vsel %vm875, %v848, %v850
        %v884 = vsel %vm875, %v852, %v854
        %v885 = vsel %vm875, %v854, %v856
        %v886 = vsel %vm875, %v858, %v860
        %v887 = vsel %vm875, %v860, %v862
        %v888 = vsel %vm875, %v864, %v866
        %v889 = vsel %vm875, %v866, %v868
        %v890 = vsel %vm875, %v870, %v872
        %v891 = vsel %vm875, %v872, %v874
        %v908 = vpack.c.bf16 %v701, %v698
        %v909 = vpack.c.bf16 %v702, %v699
        %v910 = vpack.c.bf16 %v707, %v704
        %v911 = vpack.c.bf16 %v708, %v705
        %v912 = vpack.c.bf16 %v713, %v710
        %v913 = vpack.c.bf16 %v714, %v711
        %v914 = vpack.c.bf16 %v719, %v716
        %v915 = vpack.c.bf16 %v720, %v717
        %v916 = vpack.c.bf16 %v797, %v795
        %v917 = vpack.c.bf16 %v798, %v796
        %v918 = vpack.c.bf16 %v801, %v799
        %v919 = vpack.c.bf16 %v802, %v800
        %v920 = vpack.c.bf16 %v805, %v803
        %v921 = vpack.c.bf16 %v806, %v804
        %v922 = vpack.c.bf16 %v809, %v807
        %v923 = vpack.c.bf16 %v810, %v808
        %v924 = vpack.c.bf16 %v878, %v876
        %v925 = vpack.c.bf16 %v879, %v877
        %v926 = vpack.c.bf16 %v882, %v880
        %v927 = vpack.c.bf16 %v883, %v881
        %v928 = vpack.c.bf16 %v886, %v884
        %v929 = vpack.c.bf16 %v887, %v885
        %v930 = vpack.c.bf16 %v890, %v888
        %v931 = vpack.c.bf16 %v891, %v889
        %v932 = vld [vmem:[%s3] sm:$0xff]
        %v933 = vld [vmem:[%s3 + $0x8] sm:$0xff]
        %v934 = vld [vmem:[%s3 + $0x10] sm:$0xff]
        %v935 = vld [vmem:[%s3 + $0x18] sm:$0xff]
        %v936 = vld [vmem:[%s3 + $0x20] sm:$0xff]
        %v937 = vld [vmem:[%s3 + $0x28] sm:$0xff]
        %v938 = vld [vmem:[%s3 + $0x30] sm:$0xff]
        %v939 = vld [vmem:[%s3 + $0x38] sm:$0xff]
        %v940 = vld [vmem:[%s4] sm:$0xff]
        %v941 = vld [vmem:[%s4 + $0x8] sm:$0xff]
        %v942 = vld [vmem:[%s4 + $0x10] sm:$0xff]
        %v943 = vld [vmem:[%s4 + $0x18] sm:$0xff]
        %v944 = vld [vmem:[%s4 + $0x20] sm:$0xff]
        %v945 = vld [vmem:[%s4 + $0x28] sm:$0xff]
        %v946 = vld [vmem:[%s4 + $0x30] sm:$0xff]
        %v947 = vld [vmem:[%s4 + $0x38] sm:$0xff]
        %949 = vset.pattern.permute.xlu0 0
        %950 = vperm.xlu0 %949, %v940
        %v951 = vpop.permute.xlu0 %950
        %954 = vset.pattern.permute.xlu0 0
        %955 = vperm.xlu0 %954, %v941
        %v956 = vpop.permute.xlu0 %955
        %959 = vset.pattern.permute.xlu0 0
        %960 = vperm.xlu0 %959, %v942
        %v961 = vpop.permute.xlu0 %960
        %964 = vset.pattern.permute.xlu0 0
        %965 = vperm.xlu0 %964, %v943
        %v966 = vpop.permute.xlu0 %965
        %969 = vset.pattern.permute.xlu0 0
        %970 = vperm.xlu0 %969, %v944
        %v971 = vpop.permute.xlu0 %970
        %974 = vset.pattern.permute.xlu0 0
        %975 = vperm.xlu0 %974, %v945
        %v976 = vpop.permute.xlu0 %975
        %979 = vset.pattern.permute.xlu0 0
        %980 = vperm.xlu0 %979, %v946
        %v981 = vpop.permute.xlu0 %980
        %984 = vset.pattern.permute.xlu0 0
        %985 = vperm.xlu0 %984, %v947
        %v986 = vpop.permute.xlu0 %985
        %v996 = vunpack.c.l.b16 %v932
        %v997 = vunpack.c.h.b16 %v932
        %v998 = vunpack.c.l.b16 %v933
        %v999 = vunpack.c.h.b16 %v933
        %v1000 = vunpack.c.l.b16 %v934
        %v1001 = vunpack.c.h.b16 %v934
        %v1002 = vunpack.c.l.b16 %v935
        %v1003 = vunpack.c.h.b16 %v935
        %v1004 = vunpack.c.l.b16 %v936
        %v1005 = vunpack.c.h.b16 %v936
        %v1006 = vunpack.c.l.b16 %v937
        %v1007 = vunpack.c.h.b16 %v937
        %v1008 = vunpack.c.l.b16 %v938
        %v1009 = vunpack.c.h.b16 %v938
        %v1010 = vunpack.c.l.b16 %v939
        %v1011 = vunpack.c.h.b16 %v939
        %v1012 = vpack.c.b16 %v998, %v996
        %v1013 = vpack.c.b16 %v999, %v997
        %v1014 = vpack.c.b16 %v1002, %v1000
        %v1015 = vpack.c.b16 %v1003, %v1001
        %v1016 = vpack.c.b16 %v1006, %v1004
        %v1017 = vpack.c.b16 %v1007, %v1005
        %v1018 = vpack.c.b16 %v1010, %v1008
        %v1019 = vpack.c.b16 %v1011, %v1009
        %vm1024 = vcmask 523264
        %v1026 = vsel %vm1024, %v1013, 0
        %v1029 = vsel %vm1024, %v1015, 0
        %v1032 = vsel %vm1024, %v1017, 0
        %v1035 = vsel %vm1024, %v1019, 0
        %1037 = vmatprep.subr.bf16.mxu0 %v909
        %1038 = vmatpush1.bf16.msra.mxu0 %v908
        %1039 = vmatprep.subr.bf16.mxu0 %v911
        %1040 = vmatpush1.bf16.msra.mxu0 %v910
        %1041 = vmatprep.subr.bf16.mxu0 %v913
        %1042 = vmatpush1.bf16.msra.mxu0 %v912
        %1043 = vmatprep.subr.bf16.mxu0 %v915
        %1044 = vmatpush1.bf16.msra.mxu0 %v914
        %1045 = vmatprep.subr.bf16.mxu0 %v917
        %1046 = vmatpush1.bf16.msra.mxu0 %v916
        %1047 = vmatprep.subr.bf16.mxu0 %v919
        %1048 = vmatpush1.bf16.msra.mxu0 %v918
        %1049 = vmatprep.subr.bf16.mxu0 %v921
        %1050 = vmatpush1.bf16.msra.mxu0 %v920
        %1051 = vmatprep.subr.bf16.mxu0 %v923
        %1052 = vmatpush1.bf16.msra.mxu0 %v922
        %1053 = vmatprep.subr.bf16.mxu0 %v925
        %1054 = vmatpush1.bf16.msra.mxu0 %v924
        %1055 = vmatprep.subr.bf16.mxu0 %v927
        %1056 = vmatpush1.bf16.msra.mxu0 %v926
        %1057 = vmatprep.subr.bf16.mxu0 %v929
        %1058 = vmatpush1.bf16.msra.mxu0 %v928
        %1059 = vmatprep.subr.bf16.mxu0 %v931
        %1060 = vmatpush1.bf16.msra.mxu0 %v930
        %1061 = vmatprep.subr.bf16.mxu0 0
        %1062 = vmatpush1.bf16.msra.mxu0 0
        %1063 = vmatprep.subr.bf16.mxu0 0
        %1064 = vmatpush1.bf16.msra.mxu0 0
        %1065 = vmatprep.subr.bf16.mxu0 0
        %1066 = vmatpush1.bf16.msra.mxu0 0
        %1067 = vmatprep.subr.bf16.mxu0 0
        %1068 = vmatpush1.bf16.msra.mxu0 0
        %1069 = vmatprep.mubr.bf16.mxu0 %v1026
        %1070 = vmatmul.mubr.bf16.gmra.mrb[0].mxu0 %v1012
        %v1071 = vpop.f32.mrb[0].mxu0
        %v1072 = vadd.f32 %v951, %v1071
        %v1073 = vpop.f32.mrb[0].mxu0
        %v1074 = vadd.f32 %v951, %v1073
        %v1075 = vpop.f32.mrb[0].mxu0
        %v1076 = vadd.f32 %v956, %v1075
        %v1077 = vpop.f32.mrb[0].mxu0
        %v1078 = vadd.f32 %v956, %v1077
        %1079 = vmatprep.mubr.bf16.mxu0 %v1029
        %1080 = vmatmul.mubr.bf16.gmra.mrb[0].mxu0 %v1014
        %v1081 = vpop.f32.mrb[0].mxu0
        %v1082 = vadd.f32 %v961, %v1081
        %v1083 = vpop.f32.mrb[0].mxu0
        %v1084 = vadd.f32 %v961, %v1083
        %v1085 = vpop.f32.mrb[0].mxu0
        %v1086 = vadd.f32 %v966, %v1085
        %v1087 = vpop.f32.mrb[0].mxu0
        %v1088 = vadd.f32 %v966, %v1087
        %1089 = vmatprep.mubr.bf16.mxu0 %v1032
        %1090 = vmatmul.mubr.bf16.gmra.mrb[0].mxu0 %v1016
        %v1091 = vpop.f32.mrb[0].mxu0
        %v1092 = vadd.f32 %v971, %v1091
        %v1093 = vpop.f32.mrb[0].mxu0
        %v1094 = vadd.f32 %v971, %v1093
        %v1095 = vpop.f32.mrb[0].mxu0
        %v1096 = vadd.f32 %v976, %v1095
        %v1097 = vpop.f32.mrb[0].mxu0
        %v1098 = vadd.f32 %v976, %v1097
        %1099 = vmatprep.mubr.bf16.mxu0 %v1035
        %1100 = vmatmul.mubr.bf16.gmra.mrb[0].mxu0 %v1018
        %v1101 = vpop.f32.mrb[0].mxu0
        %v1102 = vadd.f32 %v981, %v1101
        %v1103 = vpop.f32.mrb[0].mxu0
        %v1104 = vadd.f32 %v981, %v1103
        %v1105 = vpop.f32.mrb[0].mxu0
        %v1106 = vadd.f32 %v986, %v1105
        %v1107 = vpop.f32.mrb[0].mxu0
        %v1108 = vadd.f32 %v986, %v1107
        %1109 = vdwg.mxu0
        %vm1110 = vcmp.gt.f32.partialorder %v1072, 0.0
        %vm1111 = vcmp.gt.f32.partialorder %v1074, 0.0
        %vm1112 = vcmp.gt.f32.partialorder %v1076, 0.0
        %vm1113 = vcmp.gt.f32.partialorder %v1078, 0.0
        %vm1114 = vcmp.gt.f32.partialorder %v1082, 0.0
        %vm1115 = vcmp.gt.f32.partialorder %v1084, 0.0
        %vm1116 = vcmp.gt.f32.partialorder %v1086, 0.0
        %vm1117 = vcmp.gt.f32.partialorder %v1088, 0.0
        %vm1118 = vcmp.gt.f32.partialorder %v1092, 0.0
        %vm1119 = vcmp.gt.f32.partialorder %v1094, 0.0
        %vm1120 = vcmp.gt.f32.partialorder %v1096, 0.0
        %vm1121 = vcmp.gt.f32.partialorder %v1098, 0.0
        %vm1122 = vcmp.gt.f32.partialorder %v1102, 0.0
        %vm1123 = vcmp.gt.f32.partialorder %v1104, 0.0
        %vm1124 = vcmp.gt.f32.partialorder %v1106, 0.0
        %vm1125 = vcmp.gt.f32.partialorder %v1108, 0.0
        %v1126 = vmul.f32 %v1072, 0.2
        %v1127 = vmul.f32 %v1074, 0.2
        %v1128 = vmul.f32 %v1076, 0.2
        %v1129 = vmul.f32 %v1078, 0.2
        %v1130 = vmul.f32 %v1082, 0.2
        %v1131 = vmul.f32 %v1084, 0.2
        %v1132 = vmul.f32 %v1086, 0.2
        %v1133 = vmul.f32 %v1088, 0.2
        %v1134 = vmul.f32 %v1092, 0.2
        %v1135 = vmul.f32 %v1094, 0.2
        %v1136 = vmul.f32 %v1096, 0.2
        %v1137 = vmul.f32 %v1098, 0.2
        %v1138 = vmul.f32 %v1102, 0.2
        %v1139 = vmul.f32 %v1104, 0.2
        %v1140 = vmul.f32 %v1106, 0.2
        %v1141 = vmul.f32 %v1108, 0.2
        %v1142 = vsel %vm1110, %v1072, %v1126
        %v1143 = vsel %vm1111, %v1074, %v1127
        %v1144 = vsel %vm1112, %v1076, %v1128
        %v1145 = vsel %vm1113, %v1078, %v1129
        %v1146 = vsel %vm1114, %v1082, %v1130
        %v1147 = vsel %vm1115, %v1084, %v1131
        %v1148 = vsel %vm1116, %v1086, %v1132
        %v1149 = vsel %vm1117, %v1088, %v1133
        %v1150 = vsel %vm1118, %v1092, %v1134
        %v1151 = vsel %vm1119, %v1094, %v1135
        %v1152 = vsel %vm1120, %v1096, %v1136
        %v1153 = vsel %vm1121, %v1098, %v1137
        %v1154 = vsel %vm1122, %v1102, %v1138
        %v1155 = vsel %vm1123, %v1104, %v1139
        %v1156 = vsel %vm1124, %v1106, %v1140
        %v1157 = vsel %vm1125, %v1108, %v1141
        %v1158 = vpack.c.bf16 %v1144, %v1142
        %v1159 = vpack.c.bf16 %v1145, %v1143
        %v1160 = vpack.c.bf16 %v1148, %v1146
        %v1161 = vpack.c.bf16 %v1149, %v1147
        %v1162 = vpack.c.bf16 %v1152, %v1150
        %v1163 = vpack.c.bf16 %v1153, %v1151
        %v1164 = vpack.c.bf16 %v1156, %v1154
        %v1165 = vpack.c.bf16 %v1157, %v1155
        %v1166 = vld [vmem:[%s5] sm:$0xf]
        %v1167 = vld [vmem:[%s5 + $0x4] sm:$0xf]
        %v1168 = vld [vmem:[%s5 + $0x8] sm:$0xf]
        %v1169 = vld [vmem:[%s5 + $0xc] sm:$0xf]
        %v1170 = vld [vmem:[%s5 + $0x10] sm:$0xf]
        %v1171 = vld [vmem:[%s5 + $0x14] sm:$0xf]
        %v1172 = vld [vmem:[%s5 + $0x18] sm:$0xf]
        %v1173 = vld [vmem:[%s5 + $0x1c] sm:$0xf]
        %v1174 = vld [vmem:[%s6] sm:$0xff]
        %v1175 = vld [vmem:[%s6 + $0x8] sm:$0xff]
        %v1176 = vld [vmem:[%s6 + $0x10] sm:$0xff]
        %v1177 = vld [vmem:[%s6 + $0x18] sm:$0xff]
        %v1178 = vld [vmem:[%s6 + $0x20] sm:$0xff]
        %v1179 = vld [vmem:[%s6 + $0x28] sm:$0xff]
        %v1180 = vld [vmem:[%s6 + $0x30] sm:$0xff]
        %v1181 = vld [vmem:[%s6 + $0x38] sm:$0xff]
        %1183 = vset.pattern.permute.xlu0 0
        %1184 = vperm.xlu0 %1183, %v1174
        %v1185 = vpop.permute.xlu0 %1184
        %1188 = vset.pattern.permute.xlu0 0
        %1189 = vperm.xlu0 %1188, %v1175
        %v1190 = vpop.permute.xlu0 %1189
        %1193 = vset.pattern.permute.xlu0 0
        %1194 = vperm.xlu0 %1193, %v1176
        %v1195 = vpop.permute.xlu0 %1194
        %1198 = vset.pattern.permute.xlu0 0
        %1199 = vperm.xlu0 %1198, %v1177
        %v1200 = vpop.permute.xlu0 %1199
        %1203 = vset.pattern.permute.xlu0 0
        %1204 = vperm.xlu0 %1203, %v1178
        %v1205 = vpop.permute.xlu0 %1204
        %1208 = vset.pattern.permute.xlu0 0
        %1209 = vperm.xlu0 %1208, %v1179
        %v1210 = vpop.permute.xlu0 %1209
        %1213 = vset.pattern.permute.xlu0 0
        %1214 = vperm.xlu0 %1213, %v1180
        %v1215 = vpop.permute.xlu0 %1214
        %1218 = vset.pattern.permute.xlu0 0
        %1219 = vperm.xlu0 %1218, %v1181
        %v1220 = vpop.permute.xlu0 %1219
        %v1230 = vunpack.c.l.b16 %v1166
        %v1231 = vunpack.c.l.b16 %v1167
        %v1232 = vunpack.c.l.b16 %v1168
        %v1233 = vunpack.c.l.b16 %v1169
        %v1234 = vunpack.c.l.b16 %v1170
        %v1235 = vunpack.c.l.b16 %v1171
        %v1236 = vunpack.c.l.b16 %v1172
        %v1237 = vunpack.c.l.b16 %v1173
        %v1238 = vpack.c.b16 %v1231, %v1230
        %v1239 = vpack.c.b16 %v1233, %v1232
        %v1240 = vpack.c.b16 %v1235, %v1234
        %v1241 = vpack.c.b16 %v1237, %v1236
        %v1243 = vsel %vm1024, %v1238, 0
        %v1246 = vsel %vm1024, %v1239, 0
        %v1249 = vsel %vm1024, %v1240, 0
        %v1252 = vsel %vm1024, %v1241, 0
        %1254 = vmatprep.subr.bf16.mxu0 %v1159
        %1255 = vmatpush1.bf16.msra.mxu0 %v1158
        %1256 = vmatprep.subr.bf16.mxu0 %v1161
        %1257 = vmatpush1.bf16.msra.mxu0 %v1160
        %1258 = vmatprep.subr.bf16.mxu0 %v1163
        %1259 = vmatpush1.bf16.msra.mxu0 %v1162
        %1260 = vmatprep.subr.bf16.mxu0 %v1165
        %1261 = vmatpush1.bf16.msra.mxu0 %v1164
        %1262 = vmatprep.subr.bf16.mxu0 0
        %1263 = vmatpush1.bf16.msra.mxu0 0
        %1264 = vmatprep.subr.bf16.mxu0 0
        %1265 = vmatpush1.bf16.msra.mxu0 0
        %1266 = vmatprep.subr.bf16.mxu0 0
        %1267 = vmatpush1.bf16.msra.mxu0 0
        %1268 = vmatprep.subr.bf16.mxu0 0
        %1269 = vmatpush1.bf16.msra.mxu0 0
        %1270 = vmatprep.subr.bf16.mxu0 0
        %1271 = vmatpush1.bf16.msra.mxu0 0
        %1272 = vmatprep.subr.bf16.mxu0 0
        %1273 = vmatpush1.bf16.msra.mxu0 0
        %1274 = vmatprep.subr.bf16.mxu0 0
        %1275 = vmatpush1.bf16.msra.mxu0 0
        %1276 = vmatprep.subr.bf16.mxu0 0
        %1277 = vmatpush1.bf16.msra.mxu0 0
        %1278 = vmatprep.subr.bf16.mxu0 0
        %1279 = vmatpush1.bf16.msra.mxu0 0
        %1280 = vmatprep.subr.bf16.mxu0 0
        %1281 = vmatpush1.bf16.msra.mxu0 0
        %1282 = vmatprep.subr.bf16.mxu0 0
        %1283 = vmatpush1.bf16.msra.mxu0 0
        %1284 = vmatprep.subr.bf16.mxu0 0
        %1285 = vmatpush1.bf16.msra.mxu0 0
        %1286 = vmatprep.mubr.bf16.mxu0 0
        %1287 = vmatmul.mubr.bf16.gmra.mrb[0].mxu0 %v1243
        %v1288 = vpop.f32.mrb[0].mxu0
        %v1289 = vadd.f32 %v1185, %v1288
        %v1290 = vpop.f32.mrb[0].mxu0
        %v1291 = vadd.f32 %v1185, %v1290
        %v1292 = vpop.f32.mrb[0].mxu0
        %v1293 = vadd.f32 %v1190, %v1292
        %v1294 = vpop.f32.mrb[0].mxu0
        %v1295 = vadd.f32 %v1190, %v1294
        %1296 = vmatprep.mubr.bf16.mxu0 0
        %1297 = vmatmul.mubr.bf16.gmra.mrb[0].mxu0 %v1246
        %v1298 = vpop.f32.mrb[0].mxu0
        %v1299 = vadd.f32 %v1195, %v1298
        %v1300 = vpop.f32.mrb[0].mxu0
        %v1301 = vadd.f32 %v1195, %v1300
        %v1302 = vpop.f32.mrb[0].mxu0
        %v1303 = vadd.f32 %v1200, %v1302
        %v1304 = vpop.f32.mrb[0].mxu0
        %v1305 = vadd.f32 %v1200, %v1304
        %1306 = vmatprep.mubr.bf16.mxu0 0
        %1307 = vmatmul.mubr.bf16.gmra.mrb[0].mxu0 %v1249
        %v1308 = vpop.f32.mrb[0].mxu0
        %v1309 = vadd.f32 %v1205, %v1308
        %v1310 = vpop.f32.mrb[0].mxu0
        %v1311 = vadd.f32 %v1205, %v1310
        %v1312 = vpop.f32.mrb[0].mxu0
        %v1313 = vadd.f32 %v1210, %v1312
        %v1314 = vpop.f32.mrb[0].mxu0
        %v1315 = vadd.f32 %v1210, %v1314
        %1316 = vmatprep.mubr.bf16.mxu0 0
        %1317 = vmatmul.mubr.bf16.gmra.mrb[0].mxu0 %v1252
        %v1318 = vpop.f32.mrb[0].mxu0
        %v1319 = vadd.f32 %v1215, %v1318
        %v1320 = vpop.f32.mrb[0].mxu0
        %v1321 = vadd.f32 %v1215, %v1320
        %v1322 = vpop.f32.mrb[0].mxu0
        %v1323 = vadd.f32 %v1220, %v1322
        %v1324 = vpop.f32.mrb[0].mxu0
        %v1325 = vadd.f32 %v1220, %v1324
        %1326 = vdwg.mxu0
        %v1327 = vadd.f32 %v1289, %v433
        %v1328 = vadd.f32 %v1291, %v434
        %v1329 = vadd.f32 %v1293, %v435
        %v1330 = vadd.f32 %v1295, %v436
        %v1331 = vadd.f32 %v1299, %v437
        %v1332 = vadd.f32 %v1301, %v438
        %v1333 = vadd.f32 %v1303, %v439
        %v1334 = vadd.f32 %v1305, %v440
        %v1335 = vadd.f32 %v1309, %v441
        %v1336 = vadd.f32 %v1311, %v442
        %v1337 = vadd.f32 %v1313, %v443
        %v1338 = vadd.f32 %v1315, %v444
        %v1339 = vadd.f32 %v1319, %v445
        %v1340 = vadd.f32 %v1321, %v446
        %v1341 = vadd.f32 %v1323, %v447
        %v1342 = vadd.f32 %v1325, %v448
        %1343 = vst [vmem:[%s421] sm:$0xff] %v1327
        %1344 = vst [vmem:[%s421 + $0x8] sm:$0xff] %v1328
        %1345 = vst [vmem:[%s421 + $0x10] sm:$0xff] %v1329
        %1346 = vst [vmem:[%s421 + $0x18] sm:$0xff] %v1330
        %1347 = vst [vmem:[%s421 + $0x20] sm:$0xff] %v1331
        %1348 = vst [vmem:[%s421 + $0x28] sm:$0xff] %v1332
        %1349 = vst [vmem:[%s421 + $0x30] sm:$0xff] %v1333
        %1350 = vst [vmem:[%s421 + $0x38] sm:$0xff] %v1334
        %1351 = vst [vmem:[%s421 + $0x40] sm:$0xff] %v1335
        %1352 = vst [vmem:[%s421 + $0x48] sm:$0xff] %v1336
        %1353 = vst [vmem:[%s421 + $0x50] sm:$0xff] %v1337
        %1354 = vst [vmem:[%s421 + $0x58] sm:$0xff] %v1338
        %1355 = vst [vmem:[%s421 + $0x60] sm:$0xff] %v1339
        %1356 = vst [vmem:[%s421 + $0x68] sm:$0xff] %v1340
        %1357 = vst [vmem:[%s421 + $0x70] sm:$0xff] %v1341
        %1358 = vst [vmem:[%s421 + $0x78] sm:$0xff] %v1342
        %s1359 = sand.u32 %s233, 1
        %s1360 = scalar_lea.sflag [#allocation4], %s1359
        %s1361 = sand.u32 %s233, 1
        %s1362 = smul.addr %s1361, 128
        %s1363 = scalar_lea.vmem [#allocation8], %s1362
        // Predicated region
        $region61: #{tpu_custom_call.1} parent=47 // pred_check
          %p1364 = pneg %p243
        $region62: #{tpu_custom_call.1} parent=47 // pred_check_branch
          %1366 = sbr.rel (%p1364) target = $region64
        $region63: #{tpu_custom_call.1} parent=47 // pred_region
          %s1367 = smul.u32 2, %s32
          %s1369 = ssub.s32 2048, 2048
          %1370 = vsyncadd %s1360, %s1369
          %s1371 = smul.addr %s31, 32
          %s1372 = sadd.s32 %s1367, %s1371
          %s1373 = smul.addr %s1372, 128
          %s1374 = scalar_lea.hbm %s7, %s1373
          %s1375 = sshll.u32 %s1363, 4
          %s1376 = int_to_ptr.vmem [resolvable:$true] %s1375
          %1381 = dma.vmem_to_hbm [thread:$0]  %s1376, 2048, %s1374, %s1360, 256, 512, 16
        $region64: #{tpu_custom_call.1} parent=47 // pred_fallthru
          _
      $region48: #{tpu_custom_call.1} parent=5 // pred_fallthru
        _
      %p1382 = scmp.le.s32.totalorder 2, %s22
      // Predicated region
      $region65: #{tpu_custom_call.1} parent=5 // pred_check
        %p1383 = pneg %p1382
      $region66: #{tpu_custom_call.1} parent=5 // pred_check_branch
        %1385 = sbr.rel (%p1383) target = $region68
      $region67: #{tpu_custom_call.1} parent=5 // pred_region
        %s1386 = ssub.s32 %s22, 2
        // Predicated region
        $region69: #{tpu_custom_call.1} parent=67 // pred_check
          %p1387 = pneg %p249
        $region70: #{tpu_custom_call.1} parent=67 // pred_check_branch
          %1389 = sbr.rel (%p1387) target = $region72
        $region71: #{tpu_custom_call.1} parent=67 // pred_region
          %s1390 = sand.u32 %s234, 1
          %s1391 = scalar_lea.sflag [#allocation4], %s1390
          %s1392 = sand.u32 %s234, 1
          %s1393 = smul.addr %s1392, 128
          %s1394 = scalar_lea.vmem [#allocation8], %s1393
          %1395 = dma.done %s1391, 2048
        $region72: #{tpu_custom_call.1} parent=67 // pred_fallthru
          _
      $region68: #{tpu_custom_call.1} parent=5 // pred_fallthru
        _
    $region6: #{tpu_custom_call.1} parent=1 // loop_footer
      %s26 = sadd.s32 1, %s22
    $region7: #{tpu_custom_call.1} parent=1 // loop_footer_branch
      %21 = sbr.rel target = $region3
    $region8: #{tpu_custom_call.1} parent=1 // loop_exit
      _
    %1396 = vsyncpa [#allocation3], 1
    %s1397 = scalar_lea.sflag [#allocation3], 1
    %1398 = vsyncpa %s1397, 1
    %1399 = vsyncpa [#allocation6], 1
    %s1400 = scalar_lea.sflag [#allocation6], 1
    %1401 = vsyncpa %s1400, 1
    %1402 = vsyncpa [#allocation4], 1
    %s1403 = scalar_lea.sflag [#allocation4], 1
    %1404 = vsyncpa %s1403, 1

</llo_original>
